<compile_context>
chip_gen: v6e
topology: v6e:2x2x1
jax: 0.10.0
libtpu: 0.0.40
codegen_flags: <defaults>
</compile_context>

<pallas_src>
import functools
import math

import jax
import jax.numpy as jnp
from jax.experimental import pallas as pl
from jax.experimental.pallas import tpu as pltpu


def _location_kernel(h_ref, w_ref, b_ref, eps_ref, logpi_ref, l_ref,
                     *, std, logpi_const):
    h = h_ref[...]          # (TILE_B, latent_dim)
    w = w_ref[...]          # (latent_dim, msize)   -- resident across grid steps
    b = b_ref[...]          # (1, msize)            -- resident across grid steps
    eps = eps_ref[...]      # (TILE_B, msize) ~ N(0, 1)

    # fc + tanh on the MXU (f32 accumulation)
    mu = jnp.tanh(jnp.dot(h, w, preferred_element_type=jnp.float32) + b)

    # Sample via reparameterization.
    l = mu + jnp.float32(std) * eps

    # log_prob of the sample under Normal(mu, std):
    #   -(l-mu)^2/(2 std^2) - log(std) - 0.5 log(2 pi) == -0.5*eps^2 + const
    # (exact, since l - mu == std*eps). No dependence on the matmul result.
    logpi_ref[...] = jnp.float32(-0.5) * eps * eps + jnp.float32(logpi_const)
    l_ref[...] = jax.nn.sigmoid(l)


def location_forward(h, w_t, b, eps, std, *, tile_b=None):
    """h: (B, latent_dim), w_t: (latent_dim, msize), b: (1, msize),
    eps: (B, msize) std-normal noise, std: python float (compile-time const)."""
    B, latent_dim = h.shape
    msize = w_t.shape[1]

    if tile_b is None:
        tile_b = min(B, 1024)            # large tiles; tiny feature dims here
    tile_b = max(1, min(tile_b, B))

    grid_b = pl.cdiv(B, tile_b)
    padded_b = grid_b * tile_b
    if padded_b != B:                    # pad batch so blocks tile exactly
        pad = padded_b - B
        h = jnp.pad(h, ((0, pad), (0, 0)))
        eps = jnp.pad(eps, ((0, pad), (0, 0)))

    logpi_const = float(-math.log(std) - 0.5 * math.log(2.0 * math.pi))
    kernel = functools.partial(_location_kernel, std=float(std),
                               logpi_const=logpi_const)

    out_shapes = (
        jax.ShapeDtypeStruct((padded_b, msize), jnp.float32),  # logpi
        jax.ShapeDtypeStruct((padded_b, msize), jnp.float32),  # sigmoid(sample)
    )

    logpi, l = pl.pallas_call(
        kernel,
        out_shape=out_shapes,
        grid_spec=pltpu.PrefetchScalarGridSpec(
            num_scalar_prefetch=0,
            grid=(grid_b,),
            in_specs=[
                pl.BlockSpec((tile_b, latent_dim), lambda i: (i, 0)),  # h tile
                pl.BlockSpec((latent_dim, msize), lambda i: (0, 0)),   # W^T resident
                pl.BlockSpec((1, msize), lambda i: (0, 0)),            # b resident
                pl.BlockSpec((tile_b, msize), lambda i: (i, 0)),       # eps tile
            ],
            out_specs=(
                pl.BlockSpec((tile_b, msize), lambda i: (i, 0)),
                pl.BlockSpec((tile_b, msize), lambda i: (i, 0)),
            ),
        ),
        compiler_params=pltpu.CompilerParams(
            dimension_semantics=("parallel",),       # shard batch across TCs (v7x)
            vmem_limit_bytes=32 * 1024 * 1024,       # safe on v5e/v6e/v7x
        ),
    )(h, w_t, b, eps)

    if padded_b != B:
        logpi = logpi[:B]
        l = l[:B]
    return logpi, l


if __name__ == "__main__":
    # Small shapes consistent with the module: LOCATION(msize, latent_dim)
    batch, latent_dim, msize = 32, 32, 16
    std = 0.17

    key = jax.random.PRNGKey(0)
    k_h, k_w, k_b, k_eps = jax.random.split(key, 4)

    # nn.Linear-style init (uniform +/- 1/sqrt(fan_in)); weight stored pre-transposed.
    bound = 1.0 / (latent_dim ** 0.5)
    w_t = jax.random.uniform(k_w, (latent_dim, msize), jnp.float32, -bound, bound)
    b = jax.random.uniform(k_b, (1, msize), jnp.float32, -bound, bound)

    h = jax.random.normal(k_h, (batch, latent_dim), jnp.float32)
    # Noise for Normal(mu, std).sample() drawn outside the kernel (reparameterized).
    eps = jax.random.normal(k_eps, (batch, msize), jnp.float32)

    logpi, l = location_forward(h, w_t, b, eps, std, tile_b=8)
    jax.block_until_ready((logpi, l))

    # Reference check in plain JAX (mirrors the PyTorch forward).
    mu_ref = jnp.tanh(h @ w_t + b)
    samp_ref = mu_ref + std * eps
    logpi_ref = (-((samp_ref - mu_ref) ** 2) / (2 * std * std)
                 - jnp.log(jnp.float32(std)) - 0.5 * jnp.log(2.0 * jnp.pi))
    l_ref = jax.nn.sigmoid(samp_ref)
    assert jnp.allclose(logpi, logpi_ref, atol=1e-4, rtol=1e-4)
    assert jnp.allclose(l, l_ref, atol=1e-5, rtol=1e-5)

    print("KERNEL_OK")
</pallas_src>

<mosaic_0001>
module attributes {stable_mosaic.version = 11 : i64} {
  func.func @_location_kernel(%arg0: i32, %arg1: memref<8x32xf32, #tpu.memory_space<vmem>>, %arg2: memref<32x16xf32, #tpu.memory_space<vmem>>, %arg3: memref<1x16xf32, #tpu.memory_space<vmem>>, %arg4: memref<8x16xf32, #tpu.memory_space<vmem>>, %arg5: memref<8x16xf32, #tpu.memory_space<vmem>>, %arg6: memref<8x16xf32, #tpu.memory_space<vmem>>) attributes {dimension_semantics = [#tpu.dimension_semantics<parallel>], iteration_bounds = array<i64: 4>, scalar_prefetch = 0 : i64, scratch_operands = 0 : i64, tpu.core_type = #tpu.core_type<tc>, window_params = [{transform_indices = @transform_0, window_bounds = array<i64: 8, 32>}, {pipeline_mode = #tpu.pipeline_mode<synchronous>, transform_indices = @transform_1, window_bounds = array<i64: 32, 16>}, {pipeline_mode = #tpu.pipeline_mode<synchronous>, transform_indices = @transform_2, window_bounds = array<i64: 1, 16>}, {transform_indices = @transform_3, window_bounds = array<i64: 8, 16>}, {transform_indices = @transform_4, window_bounds = array<i64: 8, 16>}, {transform_indices = @transform_5, window_bounds = array<i64: 8, 16>}]} {
    %c0 = arith.constant 0 : index
    %c0_0 = arith.constant 0 : index
    %0 = vector.load %arg1[%c0, %c0_0] : memref<8x32xf32, #tpu.memory_space<vmem>>, vector<8x32xf32>
    %c0_1 = arith.constant 0 : index
    %c0_2 = arith.constant 0 : index
    %1 = vector.load %arg2[%c0_1, %c0_2] : memref<32x16xf32, #tpu.memory_space<vmem>>, vector<32x16xf32>
    %c0_3 = arith.constant 0 : index
    %c0_4 = arith.constant 0 : index
    %2 = vector.load %arg3[%c0_3, %c0_4] : memref<1x16xf32, #tpu.memory_space<vmem>>, vector<1x16xf32>
    %c0_5 = arith.constant 0 : index
    %c0_6 = arith.constant 0 : index
    %3 = vector.load %arg4[%c0_5, %c0_6] : memref<8x16xf32, #tpu.memory_space<vmem>>, vector<8x16xf32>
    %cst = arith.constant dense<0.000000e+00> : vector<8x16xf32>
    %4 = tpu.matmul %0, %1, %cst {dimension_numbers = #tpu.dot_dimension_numbers<[1], [0], [0], [1], [0, 0, 1, 1], [], []>} : vector<8x32xf32>, vector<32x16xf32>, vector<8x16xf32> -> vector<8x16xf32>
    %5 = vector.broadcast %2 : vector<1x16xf32> to vector<8x16xf32>
    %6 = arith.addf %4, %5 : vector<8x16xf32>
    %7 = math.tanh %6 : vector<8x16xf32>
    %cst_7 = arith.constant 1.700000e-01 : f32
    %8 = vector.broadcast %cst_7 : f32 to vector<8x16xf32>
    %9 = arith.mulf %8, %3 : vector<8x16xf32>
    %10 = arith.addf %7, %9 : vector<8x16xf32>
    %cst_8 = arith.constant -5.000000e-01 : f32
    %11 = vector.broadcast %cst_8 : f32 to vector<8x16xf32>
    %12 = arith.mulf %11, %3 : vector<8x16xf32>
    %13 = arith.mulf %12, %3 : vector<8x16xf32>
    %cst_9 = arith.constant 0.853018283 : f32
    %14 = vector.broadcast %cst_9 : f32 to vector<8x16xf32>
    %15 = arith.addf %13, %14 : vector<8x16xf32>
    %c0_10 = arith.constant 0 : index
    %c0_11 = arith.constant 0 : index
    %16 = vector.load %arg5[%c0_10, %c0_11] : memref<8x16xf32, #tpu.memory_space<vmem>>, vector<8x16xf32>
    tpu.vector_store %arg5[%c0_10, %c0_11], %15 {strides = array<i32>} : memref<8x16xf32, #tpu.memory_space<vmem>>, vector<8x16xf32>,
    %17 = arith.negf %10 : vector<8x16xf32>
    %18 = math.exp %17 : vector<8x16xf32>
    %cst_12 = arith.constant 1.000000e+00 : f32
    %19 = vector.broadcast %cst_12 : f32 to vector<8x16xf32>
    %20 = arith.addf %19, %18 : vector<8x16xf32>
    %21 = arith.divf %19, %20 : vector<8x16xf32>
    %c0_13 = arith.constant 0 : index
    %c0_14 = arith.constant 0 : index
    %22 = vector.load %arg6[%c0_13, %c0_14] : memref<8x16xf32, #tpu.memory_space<vmem>>, vector<8x16xf32>
    tpu.vector_store %arg6[%c0_13, %c0_14], %21 {strides = array<i32>} : memref<8x16xf32, #tpu.memory_space<vmem>>, vector<8x16xf32>,
    return
  }
  func.func @transform_0(%arg0: i32) -> (i32, i32) {
    %c0_i32 = arith.constant 0 : i32
    %c0_i32_0 = arith.constant 0 : i32
    return %arg0, %c0_i32 : i32, i32
  }
  func.func @transform_1(%arg0: i32) -> (i32, i32) {
    %c0_i32 = arith.constant 0 : i32
    %c0_i32_0 = arith.constant 0 : i32
    %c0_i32_1 = arith.constant 0 : i32
    return %c0_i32, %c0_i32_0 : i32, i32
  }
  func.func @transform_2(%arg0: i32) -> (i32, i32) {
    %c0_i32 = arith.constant 0 : i32
    %c0_i32_0 = arith.constant 0 : i32
    %c0_i32_1 = arith.constant 0 : i32
    return %c0_i32, %c0_i32_0 : i32, i32
  }
  func.func @transform_3(%arg0: i32) -> (i32, i32) {
    %c0_i32 = arith.constant 0 : i32
    %c0_i32_0 = arith.constant 0 : i32
    return %arg0, %c0_i32 : i32, i32
  }
  func.func @transform_4(%arg0: i32) -> (i32, i32) {
    %c0_i32 = arith.constant 0 : i32
    %c0_i32_0 = arith.constant 0 : i32
    return %arg0, %c0_i32 : i32, i32
  }
  func.func @transform_5(%arg0: i32) -> (i32, i32) {
    %c0_i32 = arith.constant 0 : i32
    %c0_i32_0 = arith.constant 0 : i32
    return %arg0, %c0_i32 : i32, i32
  }
}

</mosaic_0001>

<llo_original>
// kernel: tpu_custom_call.1
$region0: #{tpu_custom_call.1}
  #allocation0 [shape = 'u32[]', space=smem, size = 0x4, offset = 0x4, fixed_abs, tag = 'smem constant byte address 0x4 - core index']
  #allocation1 [shape = 'u32[144,128]{1,0:T(1,128)}', space=vmem, size = 0x12000, scoped, tag = 'internal scratch']
  %s0 = inlined_call_operand.vmem [shape: f32[32,32], index: 0, kind: input, shape index: {}]
  %s1 = inlined_call_operand.vmem [shape: f32[32,16], index: 1, kind: input, shape index: {}]
  %s2 = inlined_call_operand.vmem [shape: f32[1,16], index: 2, kind: input, shape index: {}]
  %s3 = inlined_call_operand.vmem [shape: f32[32,16], index: 3, kind: input, shape index: {}]
  %s4 = inlined_call_operand.vmem [shape: f32[32,16], index: 4, kind: output, shape index: {0}]
  %s5 = inlined_call_operand.vmem [shape: f32[32,16], index: 5, kind: output, shape index: {1}]
  %6 = xla_tuple %s4, %s5
  %s7 = sld [smem:[#allocation0]]
  $region57: #{tpu_custom_call.1} parent=0
    _
  %s9 = ssub.s32 1, %s7
  %s10 = scalar_select 0, %s9, %s7
  loop: start=0, step=1, limit=6
  $region2: #{tpu_custom_call.1} parent=0 // loop_pre_header
    _
  $region3: #{tpu_custom_call.1} parent=0 // loop_header
    %s12 = sphi 0, %s16
    %p13 = scmp.ge.s32.totalorder %s12, 6
    %s22 = sphi 0, %s24
    %s25 = sphi 0, %s22
    %s26 = sphi 0, %s25
    %s42 = sphi 0, %s26
    %s46 = sphi 0, %s46
    %s48 = sphi 0, %s46
    %s49 = sphi 0, %s48
    %s63 = sphi 0, %s49
    %s67 = sphi 0, %s67
    %s69 = sphi 0, %s67
    %s70 = sphi 0, %s69
    %s84 = sphi 0, %s70
    %s90 = sphi 0, %s92
    %s93 = sphi 0, %s90
    %s94 = sphi 0, %s93
    %s110 = sphi 0, %s94
    %s116 = sphi 0, %s118
    %s119 = sphi 0, %s116
    %s120 = sphi 0, %s119
    %s136 = sphi 0, %s120
    %s142 = sphi 0, %s144
    %s145 = sphi 0, %s142
    %s146 = sphi 0, %s145
    %s162 = sphi 0, %s146
  $region4: #{tpu_custom_call.1} parent=0 // loop_header_branch
    %15 = sbr.rel (%p13) target = $region8
  $region5: #{tpu_custom_call.1} parent=0 // loop_body
    %s17 = ssub.s32 %s12, 1
    %s18 = ssub.s32 %s12, 2
    %s19 = sadd.s32 %s12, 1
    %s20 = ssub.s32 %s12, %s19
    %p21 = scmp.eq.s32.totalorder %s20, 0
    %s23 = sadd.s32 %s22, 1
    %s24 = scalar_select %p21, %s22, %s23
    %p27 = pneg %p21
    %p28 = scmp.eq.s32.totalorder %s12, 3
    %p29 = por %p27, %p28
    %p30 = scmp.ne.s32.totalorder %s22, %s25
    %p31 = scmp.eq.s32.totalorder %s12, 0
    %p32 = por %p30, %p31
    %p33 = scmp.ne.s32.totalorder %s22, %s25
    %p34 = scmp.eq.s32.totalorder %s17, 3
    %p35 = por %p33, %p34
    %p36 = scmp.ne.s32.totalorder %s25, %s26
    %p37 = scmp.eq.s32.totalorder %s17, 0
    %p38 = por %p36, %p37
    %p39 = scmp.ne.s32.totalorder %s25, %s26
    %p40 = scmp.eq.s32.totalorder %s18, 3
    %p41 = por %p39, %p40
    %p43 = scmp.ne.s32.totalorder %s26, %s42
    %p44 = scmp.eq.s32.totalorder %s18, 0
    %p45 = por %p43, %p44
    %s47 = sadd.s32 %s46, 1
    %p50 = scmp.eq.s32.totalorder %s12, 3
    %p51 = scmp.ne.s32.totalorder %s46, %s48
    %p52 = scmp.eq.s32.totalorder %s12, 0
    %p53 = por %p51, %p52
    %p54 = scmp.ne.s32.totalorder %s46, %s48
    %p55 = scmp.eq.s32.totalorder %s17, 3
    %p56 = por %p54, %p55
    %p57 = scmp.ne.s32.totalorder %s48, %s49
    %p58 = scmp.eq.s32.totalorder %s17, 0
    %p59 = por %p57, %p58
    %p60 = scmp.ne.s32.totalorder %s48, %s49
    %p61 = scmp.eq.s32.totalorder %s18, 3
    %p62 = por %p60, %p61
    %p64 = scmp.ne.s32.totalorder %s49, %s63
    %p65 = scmp.eq.s32.totalorder %s18, 0
    %p66 = por %p64, %p65
    %s68 = sadd.s32 %s67, 1
    %p71 = scmp.eq.s32.totalorder %s12, 3
    %p72 = scmp.ne.s32.totalorder %s67, %s69
    %p73 = scmp.eq.s32.totalorder %s12, 0
    %p74 = por %p72, %p73
    %p75 = scmp.ne.s32.totalorder %s67, %s69
    %p76 = scmp.eq.s32.totalorder %s17, 3
    %p77 = por %p75, %p76
    %p78 = scmp.ne.s32.totalorder %s69, %s70
    %p79 = scmp.eq.s32.totalorder %s17, 0
    %p80 = por %p78, %p79
    %p81 = scmp.ne.s32.totalorder %s69, %s70
    %p82 = scmp.eq.s32.totalorder %s18, 3
    %p83 = por %p81, %p82
    %p85 = scmp.ne.s32.totalorder %s70, %s84
    %p86 = scmp.eq.s32.totalorder %s18, 0
    %p87 = por %p85, %p86
    %s88 = ssub.s32 %s12, %s19
    %p89 = scmp.eq.s32.totalorder %s88, 0
    %s91 = sadd.s32 %s90, 1
    %s92 = scalar_select %p89, %s90, %s91
    %p95 = pneg %p89
    %p96 = scmp.eq.s32.totalorder %s12, 3
    %p97 = por %p95, %p96
    %p98 = scmp.ne.s32.totalorder %s90, %s93
    %p99 = scmp.eq.s32.totalorder %s12, 0
    %p100 = por %p98, %p99
    %p101 = scmp.ne.s32.totalorder %s90, %s93
    %p102 = scmp.eq.s32.totalorder %s17, 3
    %p103 = por %p101, %p102
    %p104 = scmp.ne.s32.totalorder %s93, %s94
    %p105 = scmp.eq.s32.totalorder %s17, 0
    %p106 = por %p104, %p105
    %p107 = scmp.ne.s32.totalorder %s93, %s94
    %p108 = scmp.eq.s32.totalorder %s18, 3
    %p109 = por %p107, %p108
    %p111 = scmp.ne.s32.totalorder %s94, %s110
    %p112 = scmp.eq.s32.totalorder %s18, 0
    %p113 = por %p111, %p112
    %s114 = ssub.s32 %s12, %s19
    %p115 = scmp.eq.s32.totalorder %s114, 0
    %s117 = sadd.s32 %s116, 1
    %s118 = scalar_select %p115, %s116, %s117
    %p121 = pneg %p115
    %p122 = scmp.eq.s32.totalorder %s12, 3
    %p123 = por %p121, %p122
    %p124 = scmp.ne.s32.totalorder %s116, %s119
    %p125 = scmp.eq.s32.totalorder %s12, 0
    %p126 = por %p124, %p125
    %p127 = scmp.ne.s32.totalorder %s116, %s119
    %p128 = scmp.eq.s32.totalorder %s17, 3
    %p129 = por %p127, %p128
    %p130 = scmp.ne.s32.totalorder %s119, %s120
    %p131 = scmp.eq.s32.totalorder %s17, 0
    %p132 = por %p130, %p131
    %p133 = scmp.ne.s32.totalorder %s119, %s120
    %p134 = scmp.eq.s32.totalorder %s18, 3
    %p135 = por %p133, %p134
    %p137 = scmp.ne.s32.totalorder %s120, %s136
    %p138 = scmp.eq.s32.totalorder %s18, 0
    %p139 = por %p137, %p138
    %s140 = ssub.s32 %s12, %s19
    %p141 = scmp.eq.s32.totalorder %s140, 0
    %s143 = sadd.s32 %s142, 1
    %s144 = scalar_select %p141, %s142, %s143
    %p147 = pneg %p141
    %p148 = scmp.eq.s32.totalorder %s12, 3
    %p149 = por %p147, %p148
    %p150 = scmp.ne.s32.totalorder %s142, %s145
    %p151 = scmp.eq.s32.totalorder %s12, 0
    %p152 = por %p150, %p151
    %p153 = scmp.ne.s32.totalorder %s142, %s145
    %p154 = scmp.eq.s32.totalorder %s17, 3
    %p155 = por %p153, %p154
    %p156 = scmp.ne.s32.totalorder %s145, %s146
    %p157 = scmp.eq.s32.totalorder %s17, 0
    %p158 = por %p156, %p157
    %p159 = scmp.ne.s32.totalorder %s145, %s146
    %p160 = scmp.eq.s32.totalorder %s18, 3
    %p161 = por %p159, %p160
    %p163 = scmp.ne.s32.totalorder %s146, %s162
    %p164 = scmp.eq.s32.totalorder %s18, 0
    %p165 = por %p163, %p164
    %p166 = scmp.le.s32.totalorder 1, %s12
    %p167 = scmp.lt.s32.totalorder %s12, 5
    %p168 = pnand %p166, %p167
    %p169 = pneg %p168
    // Predicated region
    $region9: #{tpu_custom_call.1} parent=5 // pred_check
      _
    $region10: #{tpu_custom_call.1} parent=5 // pred_check_branch
      %171 = sbr.rel (%p168) target = $region12
    $region11: #{tpu_custom_call.1} parent=5 // pred_region
      %s172 = ssub.s32 %s12, 1
      // Predicated region
      $region13: #{tpu_custom_call.1} parent=11 // pred_check
        %p173 = pneg %p59
      $region14: #{tpu_custom_call.1} parent=11 // pred_check_branch
        %175 = sbr.rel (%p173) target = $region16
      $region15: #{tpu_custom_call.1} parent=11 // pred_region
        _
      $region16: #{tpu_custom_call.1} parent=11 // pred_fallthru
        _
      // Predicated region
      $region17: #{tpu_custom_call.1} parent=11 // pred_check
        %p176 = pneg %p80
      $region18: #{tpu_custom_call.1} parent=11 // pred_check_branch
        %178 = sbr.rel (%p176) target = $region20
      $region19: #{tpu_custom_call.1} parent=11 // pred_region
        _
      $region20: #{tpu_custom_call.1} parent=11 // pred_fallthru
        _
    $region12: #{tpu_custom_call.1} parent=5 // pred_fallthru
      _
    %p179 = scmp.lt.s32.totalorder %s12, 4
    // Predicated region
    $region21: #{tpu_custom_call.1} parent=5 // pred_check
      %p180 = pneg %p179
    $region22: #{tpu_custom_call.1} parent=5 // pred_check_branch
      %182 = sbr.rel (%p180) target = $region24
    $region23: #{tpu_custom_call.1} parent=5 // pred_region
      // Predicated region
      $region25: #{tpu_custom_call.1} parent=23 // pred_check
        %p183 = pneg %p32
      $region26: #{tpu_custom_call.1} parent=23 // pred_check_branch
        %185 = sbr.rel (%p183) target = $region28
      $region27: #{tpu_custom_call.1} parent=23 // pred_region
        %p186 = scmp.lt.s32.totalorder %s12, 3
        %s187 = scalar_select %p186, %s12, 3
        %s188 = smul.addr %s187, 8
        %s189 = scalar_lea.vmem %s0, %s188
      $region28: #{tpu_custom_call.1} parent=23 // pred_fallthru
        _
      // Predicated region
      $region29: #{tpu_custom_call.1} parent=23 // pred_check
        %p190 = pneg %p100
      $region30: #{tpu_custom_call.1} parent=23 // pred_check_branch
        %192 = sbr.rel (%p190) target = $region32
      $region31: #{tpu_custom_call.1} parent=23 // pred_region
        %p193 = scmp.lt.s32.totalorder %s12, 3
        %s194 = scalar_select %p193, %s12, 3
        %s195 = smul.addr %s194, 8
        %s196 = scalar_lea.vmem %s3, %s195
      $region32: #{tpu_custom_call.1} parent=23 // pred_fallthru
        _
    $region24: #{tpu_custom_call.1} parent=5 // pred_fallthru
      _
    %p197 = scmp.le.s32.totalorder 1, %s12
    %p198 = scmp.lt.s32.totalorder %s12, 5
    %p199 = pnand %p197, %p198
    %p200 = pneg %p199
    // Predicated region
    $region33: #{tpu_custom_call.1} parent=5 // pred_check
      _
    $region34: #{tpu_custom_call.1} parent=5 // pred_check_branch
      %202 = sbr.rel (%p199) target = $region36
    $region35: #{tpu_custom_call.1} parent=5 // pred_region
      %s203 = ssub.s32 %s12, 1
      %p204 = scmp.lt.s32.totalorder %s17, 3
      %s205 = scalar_select %p204, %s17, 3
      %s206 = smul.addr %s205, 8
      %s207 = scalar_lea.vmem %s0, %s206
      %p208 = pneg %p38
      %p209 = pneg %p35
      %p210 = pneg %p59
      %p211 = pneg %p56
      %p212 = pneg %p80
      %p213 = pneg %p77
      %p214 = scmp.lt.s32.totalorder %s17, 3
      %s215 = scalar_select %p214, %s17, 3
      %s216 = smul.addr %s215, 8
      %s217 = scalar_lea.vmem %s3, %s216
      %p218 = pneg %p106
      %p219 = pneg %p103
      %p220 = pneg %p132
      %p221 = pneg %p129
      %p222 = scmp.lt.s32.totalorder %s17, 3
      %s223 = scalar_select %p222, %s17, 3
      %s224 = smul.addr %s223, 8
      %s225 = scalar_lea.vmem %s4, %s224
      %p226 = pneg %p158
      %p227 = pneg %p155
      %p228 = scmp.lt.s32.totalorder %s17, 3
      %s229 = scalar_select %p228, %s17, 3
      %s230 = smul.addr %s229, 8
      %s231 = scalar_lea.vmem %s5, %s230
      %p232 = scmp.lt.s32.totalorder %s17, 3
      %s233 = scalar_select %p232, %s17, 3
      %s234 = smul.addr %s233, 8
      %s235 = scalar_lea.vmem %s0, %s234
      %p236 = scmp.lt.s32.totalorder %s17, 3
      %s237 = scalar_select %p236, %s17, 3
      %s238 = smul.addr %s237, 8
      %s239 = scalar_lea.vmem %s3, %s238
      %p240 = scmp.lt.s32.totalorder %s17, 3
      %s241 = scalar_select %p240, %s17, 3
      %s242 = smul.addr %s241, 8
      %s243 = scalar_lea.vmem %s4, %s242
      %p244 = scmp.lt.s32.totalorder %s17, 3
      %s245 = scalar_select %p244, %s17, 3
      %s246 = smul.addr %s245, 8
      %s247 = scalar_lea.vmem %s5, %s246
      %v248 = vld [vmem:[%s235] sm:$0xff]
      %v249 = vld [vmem:[%s1] sm:$0xff]
      %v250 = vld [vmem:[%s1 + $0x8] sm:$0xff]
      %v251 = vld [vmem:[%s1 + $0x10] sm:$0xff]
      %v252 = vld [vmem:[%s1 + $0x18] sm:$0xff]
      %v253 = vld [vmem:[%s2] sm:$0x1]
      %v254 = vld [vmem:[%s239] sm:$0xff]
      %v256 = vlaneseq
      %v257 = vshrl.u32 %v256, 7
      %v258 = vsub.s32 0, %v257
      %v259 = vrot.slane %v253, %v258
      %vm261 = vcmask 261120
      %v263 = vsel %vm261, %v248, 0
      %265 = vmatprep.subr.mxu0 0.0
      %266 = vmatpush1.msra.mxu0 0.0
      %267 = vmatprep.subr.mxu0 0.0
      %268 = vmatpush1.msra.mxu0 0.0
      %269 = vmatprep.subr.mxu0 0.0
      %270 = vmatpush1.msra.mxu0 0.0
      %271 = vmatprep.subr.mxu0 0.0
      %272 = vmatpush1.msra.mxu0 0.0
      %273 = vmatprep.subr.mxu0 0.0
      %274 = vmatpush1.msra.mxu0 0.0
      %275 = vmatprep.subr.mxu0 0.0
      %276 = vmatpush1.msra.mxu0 0.0
      %277 = vmatprep.subr.mxu0 0.0
      %278 = vmatpush1.msra.mxu0 0.0
      %279 = vmatprep.subr.mxu0 0.0
      %280 = vmatpush1.msra.mxu0 0.0
      %281 = vmatprep.subr.mxu0 0.0
      %282 = vmatpush1.msra.mxu0 0.0
      %283 = vmatprep.subr.mxu0 0.0
      %284 = vmatpush1.msra.mxu0 0.0
      %285 = vmatprep.subr.mxu0 0.0
      %286 = vmatpush1.msra.mxu0 0.0
      %287 = vmatprep.subr.mxu0 0.0
      %288 = vmatpush1.msra.mxu0 0.0
      %289 = vmatprep.subr.mxu0 0.0
      %290 = vmatpush1.msra.mxu0 %v252
      %291 = vmatprep.subr.mxu0 0.0
      %292 = vmatpush1.msra.mxu0 %v251
      %293 = vmatprep.subr.mxu0 0.0
      %294 = vmatpush1.msra.mxu0 %v250
      %295 = vmatprep.subr.mxu0 0.0
      %296 = vmatpush1.msra.mxu0 %v249
      %297 = vmatprep.subr.mxu0 0.0
      %298 = vmatpush2.msra.mxu0 0.0
      %299 = vmatprep.subr.mxu0 0.0
      %300 = vmatpush2.msra.mxu0 0.0
      %301 = vmatprep.subr.mxu0 0.0
      %302 = vmatpush2.msra.mxu0 0.0
      %303 = vmatprep.subr.mxu0 0.0
      %304 = vmatpush2.msra.mxu0 0.0
      %305 = vmatprep.subr.mxu0 0.0
      %306 = vmatpush2.msra.mxu0 0.0
      %307 = vmatprep.subr.mxu0 0.0
      %308 = vmatpush2.msra.mxu0 0.0
      %309 = vmatprep.subr.mxu0 0.0
      %310 = vmatpush2.msra.mxu0 0.0
      %311 = vmatprep.subr.mxu0 0.0
      %312 = vmatpush2.msra.mxu0 0.0
      %313 = vmatprep.subr.mxu0 0.0
      %314 = vmatpush2.msra.mxu0 0.0
      %315 = vmatprep.subr.mxu0 0.0
      %316 = vmatpush2.msra.mxu0 0.0
      %317 = vmatprep.subr.mxu0 0.0
      %318 = vmatpush2.msra.mxu0 0.0
      %319 = vmatprep.subr.mxu0 0.0
      %320 = vmatpush2.msra.mxu0 0.0
      %321 = vmatprep.subr.mxu0 0.0
      %322 = vmatpush2.msra.mxu0 0.0
      %323 = vmatprep.subr.mxu0 0.0
      %324 = vmatpush2.msra.mxu0 0.0
      %325 = vmatprep.subr.mxu0 0.0
      %326 = vmatpush2.msra.mxu0 0.0
      %327 = vmatprep.subr.mxu0 0.0
      %328 = vmatpush2.msra.mxu0 0.0
      %329 = vmatprep.mubr.f32.mxu0 0.0
      %330 = vmatmul.mubr.f32.gmra.mxu0 %v263
      %v331 = vpop.f32.mrf.mxu0
      %v332 = vadd.f32 %v259, %v331
      %v333 = vpop.f32.mrf.mxu0
      %334 = vdwg.mxu0
      %v335 = vtanh.pop %v332
      %v336 = vmul.f32 %v254, 0.17
      %v337 = vadd.f32 %v335, %v336
      %v338 = vmul.f32 %v254, -0.5
      %v339 = vmul.f32 %v338, %v254
      %v340 = vadd.f32 %v339, 0.8530183
      %vm341 = vcmask 130048
      %342 = vst.msk [vmem:[%s243] sm:$0xff] %vm341, %v340
      %v343 = vxor.u32 %v337, 2147483648
      %v344 = vmul.f32 %v343, 1.442695
      %v345 = vpow.pop %v344
      %v346 = vadd.f32 %v345, 1.0
      %v347 = vrcp.pop %v346
      %v348 = vmul.f32 1.0, %v347
      %349 = vst.msk [vmem:[%s247] sm:$0xff] %vm341, %v348
      %p350 = scmp.lt.s32.totalorder %s17, 3
      %s351 = scalar_select %p350, %s17, 3
      %s352 = smul.addr %s351, 8
      %s353 = scalar_lea.vmem %s4, %s352
      %p354 = scmp.lt.s32.totalorder %s17, 3
      %s355 = scalar_select %p354, %s17, 3
      %s356 = smul.addr %s355, 8
      %s357 = scalar_lea.vmem %s5, %s356
      // Predicated region
      $region37: #{tpu_custom_call.1} parent=35 // pred_check
        %p358 = pneg %p129
      $region38: #{tpu_custom_call.1} parent=35 // pred_check_branch
        %360 = sbr.rel (%p358) target = $region40
      $region39: #{tpu_custom_call.1} parent=35 // pred_region
        _
      $region40: #{tpu_custom_call.1} parent=35 // pred_fallthru
        _
      // Predicated region
      $region41: #{tpu_custom_call.1} parent=35 // pred_check
        %p361 = pneg %p155
      $region42: #{tpu_custom_call.1} parent=35 // pred_check_branch
        %363 = sbr.rel (%p361) target = $region44
      $region43: #{tpu_custom_call.1} parent=35 // pred_region
        _
      $region44: #{tpu_custom_call.1} parent=35 // pred_fallthru
        _
    $region36: #{tpu_custom_call.1} parent=5 // pred_fallthru
      _
    %p364 = scmp.le.s32.totalorder 2, %s12
    // Predicated region
    $region45: #{tpu_custom_call.1} parent=5 // pred_check
      %p365 = pneg %p364
    $region46: #{tpu_custom_call.1} parent=5 // pred_check_branch
      %367 = sbr.rel (%p365) target = $region48
    $region47: #{tpu_custom_call.1} parent=5 // pred_region
      %s368 = ssub.s32 %s12, 2
      // Predicated region
      $region49: #{tpu_custom_call.1} parent=47 // pred_check
        %p369 = pneg %p135
      $region50: #{tpu_custom_call.1} parent=47 // pred_check_branch
        %371 = sbr.rel (%p369) target = $region52
      $region51: #{tpu_custom_call.1} parent=47 // pred_region
        %p372 = scmp.lt.s32.totalorder %s18, 3
        %s373 = scalar_select %p372, %s18, 3
        %s374 = smul.addr %s373, 8
        %s375 = scalar_lea.vmem %s4, %s374
      $region52: #{tpu_custom_call.1} parent=47 // pred_fallthru
        _
      // Predicated region
      $region53: #{tpu_custom_call.1} parent=47 // pred_check
        %p376 = pneg %p161
      $region54: #{tpu_custom_call.1} parent=47 // pred_check_branch
        %378 = sbr.rel (%p376) target = $region56
      $region55: #{tpu_custom_call.1} parent=47 // pred_region
        %p379 = scmp.lt.s32.totalorder %s18, 3
        %s380 = scalar_select %p379, %s18, 3
        %s381 = smul.addr %s380, 8
        %s382 = scalar_lea.vmem %s5, %s381
      $region56: #{tpu_custom_call.1} parent=47 // pred_fallthru
        _
    $region48: #{tpu_custom_call.1} parent=5 // pred_fallthru
      _
  $region6: #{tpu_custom_call.1} parent=0 // loop_footer
    %s16 = sadd.s32 1, %s12
  $region7: #{tpu_custom_call.1} parent=0 // loop_footer_branch
    %11 = sbr.rel target = $region3
  $region8: #{tpu_custom_call.1} parent=0 // loop_exit
    _

</llo_original>
